<compile_context>
chip_gen: v5e
topology: v5e:2x2
jax: 0.10.0
libtpu: 0.0.40
codegen_flags: <defaults>
</compile_context>

<pallas_src>
import functools

import jax
import jax.numpy as jnp
from jax.experimental import pallas as pl
from jax.experimental.pallas import tpu as pltpu

LANE = 128     # TPU lane width (last dim)
SUBLANE = 8    # f32 sublane tile (second-to-last dim)


def fused_affine_kernel(x_ref, w_ref, b_ref, o_ref):
    # x_ref: (B_pad, 128) VMEM; w_ref: (128, 128) VMEM; b_ref: (1, 128) VMEM
    acc = jnp.dot(x_ref[...], w_ref[...], preferred_element_type=jnp.float32)
    o_ref[...] = (acc + b_ref[...]).astype(o_ref.dtype)


def compose_affine_chain(weights, biases):
    """Fold a chain of Linear layers (PyTorch (OUT, IN) layout) into one padded
    affine map y = x @ W + b with W: (128, 128), b: (1, 128).  Runs ONCE at init."""
    W = None
    b = None
    for w, bias in zip(weights, biases):
        out_f, in_f = w.shape
        assert in_f <= LANE and out_f <= LANE, "features must fit in one lane tile"
        w_pad = jnp.zeros((LANE, LANE), jnp.float32).at[:in_f, :out_f].set(w.T)
        b_pad = jnp.zeros((1, LANE), jnp.float32).at[0, :out_f].set(bias)
        if W is None:
            W, b = w_pad, b_pad
        else:
            W = W @ w_pad
            b = b @ w_pad + b_pad
    return W, b


@functools.partial(jax.jit, static_argnames=())
def apply_fused(x, W, b):
    """x: (B, IN) f32.  Returns the lane-dense padded output (B_pad, 128);
    slice [:B, :OUT] lazily at the consumer if a tight output is needed."""
    B, IN = x.shape
    B_pad = ((B + SUBLANE - 1) // SUBLANE) * SUBLANE
    # Single fused pad op: batch -> multiple of 8, features -> 128.
    x_pad = jnp.pad(x, ((0, B_pad - B), (0, LANE - IN)))

    # Single invocation, no grid: all operands resident in VMEM (~70 KiB total),
    # one MXU pass, one lane-dense (B_pad, 128) store.
    # TODO(synk): for large B add a batch grid axis (block ~(256-512, 128)) with
    # dimension_semantics=("parallel",) so both v7x TensorCores get work, and
    # consider bf16 MXU operands on v6e/v7x.
    return pl.pallas_call(
        fused_affine_kernel,
        out_shape=jax.ShapeDtypeStruct((B_pad, LANE), x.dtype),
        in_specs=[
            pl.BlockSpec(memory_space=pltpu.MemorySpace.VMEM),
            pl.BlockSpec(memory_space=pltpu.MemorySpace.VMEM),
            pl.BlockSpec(memory_space=pltpu.MemorySpace.VMEM),
        ],
        out_specs=pl.BlockSpec(memory_space=pltpu.MemorySpace.VMEM),
    )(x_pad, W, b)


if __name__ == "__main__":
    key = jax.random.PRNGKey(0)
    k_w1, k_b1, k_w2, k_b2, k_x = jax.random.split(key, 5)

    B, IN, OUT = 8, 10, 10

    # Deterministic init mimicking nn.Linear's uniform(-1/sqrt(in), 1/sqrt(in)).
    bound = 1.0 / jnp.sqrt(IN)
    w1 = jax.random.uniform(k_w1, (OUT, IN), jnp.float32, -bound, bound)
    b1 = jax.random.uniform(k_b1, (OUT,), jnp.float32, -bound, bound)
    w2 = jax.random.uniform(k_w2, (OUT, IN), jnp.float32, -bound, bound)
    b2 = jax.random.uniform(k_b2, (OUT,), jnp.float32, -bound, bound)

    x = jax.random.normal(k_x, (B, IN), jnp.float32)

    # --- init-time work (done once, off the per-call path) ---
    W, bias = compose_affine_chain([w1, w2], [b1, b2])
    W = jax.block_until_ready(W)

    # --- hot path: one jitted call = pad + single-pass pallas kernel ---
    y_pad = apply_fused(x, W, bias)
    y_pad = jax.block_until_ready(y_pad)

    # Lazy slice only for the correctness check (not part of the hot path).
    y = y_pad[:B, :OUT]

    # Reference: sequential application of the two Linear layers.
    y_ref = (x @ w1.T + b1) @ w2.T + b2
    assert jnp.allclose(y, y_ref, atol=1e-5, rtol=1e-5), "mismatch vs reference"
    # Padded lanes must remain exactly zero.
    assert jnp.all(y_pad[:, OUT:] == 0.0) and jnp.all(y_pad[B:, :] == 0.0)

    print("KERNEL_OK")
</pallas_src>

<mosaic_0001>
module attributes {stable_mosaic.version = 11 : i64} {
  func.func @fused_affine_kernel(%arg0: memref<8x128xf32, #tpu.memory_space<vmem>>, %arg1: memref<128x128xf32, #tpu.memory_space<vmem>>, %arg2: memref<1x128xf32, #tpu.memory_space<vmem>>, %arg3: memref<8x128xf32, #tpu.memory_space<vmem>>) attributes {dimension_semantics = [], scalar_prefetch = 0 : i64, scratch_operands = 0 : i64, tpu.core_type = #tpu.core_type<tc>} {
    %c0 = arith.constant 0 : index
    %c0_0 = arith.constant 0 : index
    %0 = vector.load %arg0[%c0, %c0_0] : memref<8x128xf32, #tpu.memory_space<vmem>>, vector<8x128xf32>
    %c0_1 = arith.constant 0 : index
    %c0_2 = arith.constant 0 : index
    %1 = vector.load %arg1[%c0_1, %c0_2] : memref<128x128xf32, #tpu.memory_space<vmem>>, vector<128x128xf32>
    %cst = arith.constant dense<0.000000e+00> : vector<8x128xf32>
    %2 = tpu.matmul %0, %1, %cst {dimension_numbers = #tpu.dot_dimension_numbers<[1], [0], [0], [1], [0, 0, 1, 1], [], []>} : vector<8x128xf32>, vector<128x128xf32>, vector<8x128xf32> -> vector<8x128xf32>
    %c0_3 = arith.constant 0 : index
    %c0_4 = arith.constant 0 : index
    %3 = vector.load %arg2[%c0_3, %c0_4] : memref<1x128xf32, #tpu.memory_space<vmem>>, vector<1x128xf32>
    %4 = vector.broadcast %3 : vector<1x128xf32> to vector<8x128xf32>
    %5 = arith.addf %2, %4 : vector<8x128xf32>
    %c0_5 = arith.constant 0 : index
    %c0_6 = arith.constant 0 : index
    %6 = vector.load %arg3[%c0_5, %c0_6] : memref<8x128xf32, #tpu.memory_space<vmem>>, vector<8x128xf32>
    tpu.vector_store %arg3[%c0_5, %c0_6], %5 {strides = array<i32>} : memref<8x128xf32, #tpu.memory_space<vmem>>, vector<8x128xf32>,
    return
  }
}

</mosaic_0001>

<llo_original>
// kernel: apply_fused.1
$region0: #{apply_fused.1}
  #allocation0 [shape = 'u32[]', space=smem, size = 0x4, offset = 0x4, fixed_abs, tag = 'smem constant byte address 0x4 - core index']
  #allocation1 [shape = 'u32[72,128]{1,0:T(1,128)}', space=vmem, size = 0x9000, scoped, tag = 'internal scratch']
  %s0 = inlined_call_operand.vmem [shape: f32[8,128], index: 0, kind: input, shape index: {}]
  %s1 = inlined_call_operand.hbm [shape: f32[128,128], index: 1, kind: input, shape index: {}]
  %s2 = inlined_call_operand.vmem [shape: f32[1,128], index: 2, kind: input, shape index: {}]
  %s3 = inlined_call_operand.hbm [shape: f32[8,128], index: 3, kind: output, shape index: {}]
  %s4 = sld [smem:[#allocation0]]
  $region26: #{apply_fused.1} parent=0
    _
  %s6 = ssub.s32 1, %s4
  %s7 = scalar_select 0, %s6, %s4
  $region1: #{apply_fused.1} parent=0
    #allocation2 [shape = 'u8[65536]{0}', space=vmem, size = 0x10000, scoped, tag = 'input window, operand 1, single buffered']
    #allocation3 [shape = 's32[1]{0}', space=sflag, size = 0x4, scoped, tag = 'scoped memory for apply_fused.1']
    #allocation4 [shape = 's32[1]{0}', space=sflag, size = 0x4, scoped, tag = 'scoped memory for apply_fused.1']
    #allocation5 [shape = 'u8[4096]{0}', space=vmem, size = 0x1000, scoped, tag = 'output window, operand 0, single buffered']
    %8 = vsyncpa [#allocation3], 0
    %9 = vsyncpa [#allocation4], 0
    // Predicated region
    $region2: #{apply_fused.1} parent=1 // pred_check
      _
    $region3: #{apply_fused.1} parent=1 // pred_check_branch
      %11 = sbr.rel (0) target = $region5
    $region4: #{apply_fused.1} parent=1 // pred_region
      _
    $region5: #{apply_fused.1} parent=1 // pred_fallthru
      _
    // Predicated region
    $region6: #{apply_fused.1} parent=1 // pred_check
      _
    $region7: #{apply_fused.1} parent=1 // pred_check_branch
      %13 = sbr.rel (0) target = $region9
    $region8: #{apply_fused.1} parent=1 // pred_region
      %15 = vsyncadd [#allocation3], 0
      %s16 = sshll.u32 %s1, 4
      %s17 = int_to_ptr.hbm [resolvable:$true] %s16
      %s18 = sshll.u32 [#allocation2], 4
      %s19 = int_to_ptr.vmem [resolvable:$true] %s18
      %24 = dma.hbm_to_vmem [thread:$0]  %s17, 2048, %s19, [#allocation3], 128, 128, 8
    $region9: #{apply_fused.1} parent=1 // pred_fallthru
      _
    // Predicated region
    $region10: #{apply_fused.1} parent=1 // pred_check
      _
    $region11: #{apply_fused.1} parent=1 // pred_check_branch
      %26 = sbr.rel (0) target = $region13
    $region12: #{apply_fused.1} parent=1 // pred_region
      _
    $region13: #{apply_fused.1} parent=1 // pred_fallthru
      _
    // Predicated region
    $region14: #{apply_fused.1} parent=1 // pred_check
      _
    $region15: #{apply_fused.1} parent=1 // pred_check_branch
      %28 = sbr.rel (0) target = $region17
    $region16: #{apply_fused.1} parent=1 // pred_region
      %30 = dma.done [#allocation3], 2048
    $region17: #{apply_fused.1} parent=1 // pred_fallthru
      _
    %v31 = vld [vmem:[%s0] sm:$0xff]
    %v32 = vld [vmem:[#allocation2] sm:$0xff]
    %v33 = vld [vmem:[#allocation2 + $0x8] sm:$0xff]
    %v34 = vld [vmem:[#allocation2 + $0x10] sm:$0xff]
    %v35 = vld [vmem:[#allocation2 + $0x18] sm:$0xff]
    %v36 = vld [vmem:[#allocation2 + $0x20] sm:$0xff]
    %v37 = vld [vmem:[#allocation2 + $0x28] sm:$0xff]
    %v38 = vld [vmem:[#allocation2 + $0x30] sm:$0xff]
    %v39 = vld [vmem:[#allocation2 + $0x38] sm:$0xff]
    %v40 = vld [vmem:[#allocation2 + $0x40] sm:$0xff]
    %v41 = vld [vmem:[#allocation2 + $0x48] sm:$0xff]
    %v42 = vld [vmem:[#allocation2 + $0x50] sm:$0xff]
    %v43 = vld [vmem:[#allocation2 + $0x58] sm:$0xff]
    %v44 = vld [vmem:[#allocation2 + $0x60] sm:$0xff]
    %v45 = vld [vmem:[#allocation2 + $0x68] sm:$0xff]
    %v46 = vld [vmem:[#allocation2 + $0x70] sm:$0xff]
    %v47 = vld [vmem:[#allocation2 + $0x78] sm:$0xff]
    %v48 = vld [vmem:[%s2] sm:$0x1]
    %v50 = vperm.slane %v48, 0
    %52 = vmatpush.msra.mxu0 %v47
    %53 = vmatpush.msra.mxu0 %v46
    %54 = vmatpush.msra.mxu0 %v45
    %55 = vmatpush.msra.mxu0 %v44
    %56 = vmatpush.msra.mxu0 %v43
    %57 = vmatpush.msra.mxu0 %v42
    %58 = vmatpush.msra.mxu0 %v41
    %59 = vmatpush.msra.mxu0 %v40
    %60 = vmatpush.msra.mxu0 %v39
    %61 = vmatpush.msra.mxu0 %v38
    %62 = vmatpush.msra.mxu0 %v37
    %63 = vmatpush.msra.mxu0 %v36
    %64 = vmatpush.msra.mxu0 %v35
    %65 = vmatpush.msra.mxu0 %v34
    %66 = vmatpush.msra.mxu0 %v33
    %67 = vmatpush.msra.mxu0 %v32
    %68 = vmatmul.f32.gmra.mxu0 %v31
    %v69 = vpop.f32.mrf.mxu0
    %v70 = vadd.f32 %v50, %v69
    %71 = vdwg.mxu0
    %72 = vst [vmem:[#allocation5] sm:$0xff] %v70
    // Predicated region
    $region18: #{apply_fused.1} parent=1 // pred_check
      _
    $region19: #{apply_fused.1} parent=1 // pred_check_branch
      %74 = sbr.rel (0) target = $region21
    $region20: #{apply_fused.1} parent=1 // pred_region
      %76 = vsyncadd [#allocation4], 0
      %s78 = sshll.u32 [#allocation5], 4
      %s79 = int_to_ptr.vmem [resolvable:$true] %s78
      %s80 = sshll.u32 %s3, 4
      %s81 = int_to_ptr.hbm [resolvable:$true] %s80
      %83 = dma.vmem_to_hbm [thread:$0]  %s79, 128, %s81, [#allocation4]
    $region21: #{apply_fused.1} parent=1 // pred_fallthru
      _
    // Predicated region
    $region22: #{apply_fused.1} parent=1 // pred_check
      _
    $region23: #{apply_fused.1} parent=1 // pred_check_branch
      %85 = sbr.rel (0) target = $region25
    $region24: #{apply_fused.1} parent=1 // pred_region
      %87 = dma.done [#allocation4], 128
    $region25: #{apply_fused.1} parent=1 // pred_fallthru
      _
    %88 = vsyncpa [#allocation3], 1
    %89 = vsyncpa [#allocation4], 1

</llo_original>
